<compile_context>
chip_gen: v6e
topology: v6e:2x2x1
jax: 0.10.0
libtpu: 0.0.40
codegen_flags: <defaults>
</compile_context>

<pallas_src>
import functools

import jax
import jax.numpy as jnp
from jax.experimental import pallas as pl
from jax.experimental.pallas import tpu as pltpu

_LANE = 128
_SUBLANE = 8


def _round_up(n: int, m: int) -> int:
    return ((n + m - 1) // m) * m


def _choose_block_rows(batch: int, block_rows) -> int:
    """Pick a sublane-aligned row tile; ensure >=2 grid steps when possible (v7x)."""
    if block_rows is None:
        block_rows = 2048  # tunable; ~1.3 MiB/buffer at IN=OUT=32..128, well under VMEM
    if _SUBLANE < batch <= block_rows:
        # Whole batch would fit in one step -> split into two balanced steps so
        # both v7x TensorCores get work under dimension_semantics=("parallel",).
        block_rows = _round_up(pl.cdiv(batch, 2), _SUBLANE)
    block_rows = min(block_rows, _round_up(batch, _SUBLANE))
    return max(_SUBLANE, _round_up(block_rows, _SUBLANE))


def _siamese_linear_kernel(x1_ref, x2_ref, w_ref, b_ref, y1_ref, y2_ref):
    # Shared resident weight/bias; two MXU matmuls (f32 accumulation) + VPU bias add.
    w = w_ref[...]
    bias = b_ref[...]
    y1_ref[...] = (
        jnp.dot(x1_ref[...], w, preferred_element_type=jnp.float32) + bias
    ).astype(y1_ref.dtype)
    y2_ref[...] = (
        jnp.dot(x2_ref[...], w, preferred_element_type=jnp.float32) + bias
    ).astype(y2_ref.dtype)


def _linear_kernel(x_ref, w_ref, b_ref, y_ref):
    y_ref[...] = (
        jnp.dot(x_ref[...], w_ref[...], preferred_element_type=jnp.float32) + b_ref[...]
    ).astype(y_ref.dtype)


def _prep_params(w, b, pad_out_lanes: bool):
    in_f, out_f = w.shape
    out_cols = _round_up(out_f, _LANE) if pad_out_lanes else out_f
    wp = w if out_cols == out_f else jnp.pad(w, ((0, 0), (0, out_cols - out_f)))
    b2d = b.reshape(1, out_f)
    bp = b2d if out_cols == out_f else jnp.pad(b2d, ((0, 0), (0, out_cols - out_f)))
    return wp, bp, in_f, out_f, out_cols


def siamese_forward_pair(x1, x2, w, b, *, block_rows=None, pad_out_lanes=False):
    """Both siamese branches through the shared Linear in ONE kernel launch.

    w is (in_features, out_features) — i.e. torch weight already transposed.
    """
    assert x1.shape == x2.shape, "siamese branches must share a batch shape"
    B, IN = x1.shape
    wp, bp, in_f, OUT, out_cols = _prep_params(w, b, pad_out_lanes)
    assert IN == in_f

    block_rows = _choose_block_rows(B, block_rows)
    grid = (pl.cdiv(B, block_rows),)

    itemsize = jnp.dtype(x1.dtype).itemsize
    cost = pl.CostEstimate(
        flops=2 * 2 * B * IN * OUT,
        transcendentals=0,
        bytes_accessed=(2 * B * IN + wp.size + bp.size + 2 * B * out_cols) * itemsize,
    )

    x_spec = pl.BlockSpec((block_rows, IN), lambda i: (i, 0))
    y_spec = pl.BlockSpec((block_rows, out_cols), lambda i: (i, 0))
    w_spec = pl.BlockSpec((IN, out_cols), lambda i: (0, 0))   # resident across steps
    b_spec = pl.BlockSpec((1, out_cols), lambda i: (0, 0))    # resident across steps

    y1, y2 = pl.pallas_call(
        _siamese_linear_kernel,
        out_shape=(
            jax.ShapeDtypeStruct((B, out_cols), x1.dtype),
            jax.ShapeDtypeStruct((B, out_cols), x2.dtype),
        ),
        grid_spec=pl.GridSpec(
            grid=grid,
            in_specs=[x_spec, x_spec, w_spec, b_spec],
            out_specs=(y_spec, y_spec),
        ),
        compiler_params=pltpu.CompilerParams(dimension_semantics=("parallel",)),
        cost_estimate=cost,
    )(x1, x2, wp, bp)

    if out_cols != OUT:
        # Padded columns are zeros; slice at the consumer (fuses inside a jit).
        y1 = y1[:, :OUT]
        y2 = y2[:, :OUT]
    return y1, y2


def siamese_forward(x, w, b, *, block_rows=None, pad_out_lanes=False):
    """Single-branch forward (matches the module's `forward(x)` exactly)."""
    B, IN = x.shape
    wp, bp, in_f, OUT, out_cols = _prep_params(w, b, pad_out_lanes)
    assert IN == in_f

    block_rows = _choose_block_rows(B, block_rows)
    grid = (pl.cdiv(B, block_rows),)

    itemsize = jnp.dtype(x.dtype).itemsize
    cost = pl.CostEstimate(
        flops=2 * B * IN * OUT,
        transcendentals=0,
        bytes_accessed=(B * IN + wp.size + bp.size + B * out_cols) * itemsize,
    )

    y = pl.pallas_call(
        _linear_kernel,
        out_shape=jax.ShapeDtypeStruct((B, out_cols), x.dtype),
        grid_spec=pl.GridSpec(
            grid=grid,
            in_specs=[
                pl.BlockSpec((block_rows, IN), lambda i: (i, 0)),
                pl.BlockSpec((IN, out_cols), lambda i: (0, 0)),
                pl.BlockSpec((1, out_cols), lambda i: (0, 0)),
            ],
            out_specs=pl.BlockSpec((block_rows, out_cols), lambda i: (i, 0)),
        ),
        compiler_params=pltpu.CompilerParams(dimension_semantics=("parallel",)),
        cost_estimate=cost,
    )(x, wp, bp)

    if out_cols != OUT:
        y = y[:, :OUT]
    return y


if __name__ == "__main__":
    # Synthetic, deterministic parameter init (no checkpoint load).
    BATCH = 12          # per siamese branch; not a multiple of 8 -> exercises the
                        # ragged cdiv-grid path (2 steps of 8 rows, last masked).
    IN_FEATURES = 32
    OUT_FEATURES = 32

    key = jax.random.PRNGKey(0)
    kx1, kx2, kw, kb = jax.random.split(key, 4)

    x1 = jax.random.normal(kx1, (BATCH, IN_FEATURES), dtype=jnp.float32)
    x2 = jax.random.normal(kx2, (BATCH, IN_FEATURES), dtype=jnp.float32)

    # PyTorch nn.Linear stores weight as (out_features, in_features); transpose
    # once in glue code so the kernel sees (in_features, out_features).
    w_torch_layout = jax.random.normal(
        kw, (OUT_FEATURES, IN_FEATURES), dtype=jnp.float32
    ) * (1.0 / jnp.sqrt(IN_FEATURES))
    b = jax.random.normal(kb, (OUT_FEATURES,), dtype=jnp.float32) * 0.01

    pair_fn = jax.jit(functools.partial(siamese_forward_pair))
    single_fn = jax.jit(functools.partial(siamese_forward))

    y1, y2 = pair_fn(x1, x2, w_torch_layout.T, b)
    y_single = single_fn(x1, w_torch_layout.T, b)
    y1, y2, y_single = jax.block_until_ready((y1, y2, y_single))

    # Cross-check against the pure-JAX reference of the same forward pass.
    y1_ref = x1 @ w_torch_layout.T + b
    y2_ref = x2 @ w_torch_layout.T + b
    assert y1.shape == (BATCH, OUT_FEATURES)
    assert y2.shape == (BATCH, OUT_FEATURES)
    assert jnp.allclose(y1, y1_ref, atol=1e-5, rtol=1e-5)
    assert jnp.allclose(y2, y2_ref, atol=1e-5, rtol=1e-5)
    assert jnp.allclose(y_single, y1_ref, atol=1e-5, rtol=1e-5)

    print("KERNEL_OK")
</pallas_src>

<mosaic_0001>
module attributes {stable_mosaic.version = 11 : i64} {
  func.func @_siamese_linear_kernel(%arg0: i32, %arg1: memref<8x32xf32, #tpu.memory_space<vmem>>, %arg2: memref<8x32xf32, #tpu.memory_space<vmem>>, %arg3: memref<32x32xf32, #tpu.memory_space<vmem>>, %arg4: memref<1x32xf32, #tpu.memory_space<vmem>>, %arg5: memref<8x32xf32, #tpu.memory_space<vmem>>, %arg6: memref<8x32xf32, #tpu.memory_space<vmem>>) attributes {dimension_semantics = [#tpu.dimension_semantics<parallel>], iteration_bounds = array<i64: 2>, scalar_prefetch = 0 : i64, scratch_operands = 0 : i64, tpu.core_type = #tpu.core_type<tc>, window_params = [{transform_indices = @transform_0, window_bounds = array<i64: 8, 32>}, {transform_indices = @transform_1, window_bounds = array<i64: 8, 32>}, {pipeline_mode = #tpu.pipeline_mode<synchronous>, transform_indices = @transform_2, window_bounds = array<i64: 32, 32>}, {pipeline_mode = #tpu.pipeline_mode<synchronous>, transform_indices = @transform_3, window_bounds = array<i64: 1, 32>}, {transform_indices = @transform_4, window_bounds = array<i64: 8, 32>}, {transform_indices = @transform_5, window_bounds = array<i64: 8, 32>}]} {
    %c0 = arith.constant 0 : index
    %c0_0 = arith.constant 0 : index
    %0 = vector.load %arg3[%c0, %c0_0] : memref<32x32xf32, #tpu.memory_space<vmem>>, vector<32x32xf32>
    %c0_1 = arith.constant 0 : index
    %c0_2 = arith.constant 0 : index
    %1 = vector.load %arg4[%c0_1, %c0_2] : memref<1x32xf32, #tpu.memory_space<vmem>>, vector<1x32xf32>
    %c0_3 = arith.constant 0 : index
    %c0_4 = arith.constant 0 : index
    %2 = vector.load %arg1[%c0_3, %c0_4] : memref<8x32xf32, #tpu.memory_space<vmem>>, vector<8x32xf32>
    %cst = arith.constant dense<0.000000e+00> : vector<8x32xf32>
    %3 = tpu.matmul %2, %0, %cst {dimension_numbers = #tpu.dot_dimension_numbers<[1], [0], [0], [1], [0, 0, 1, 1], [], []>} : vector<8x32xf32>, vector<32x32xf32>, vector<8x32xf32> -> vector<8x32xf32>
    %4 = vector.broadcast %1 : vector<1x32xf32> to vector<8x32xf32>
    %5 = arith.addf %3, %4 : vector<8x32xf32>
    %c0_5 = arith.constant 0 : index
    %c0_6 = arith.constant 0 : index
    %6 = vector.load %arg5[%c0_5, %c0_6] : memref<8x32xf32, #tpu.memory_space<vmem>>, vector<8x32xf32>
    tpu.vector_store %arg5[%c0_5, %c0_6], %5 {strides = array<i32>} : memref<8x32xf32, #tpu.memory_space<vmem>>, vector<8x32xf32>,
    %c0_7 = arith.constant 0 : index
    %c0_8 = arith.constant 0 : index
    %7 = vector.load %arg2[%c0_7, %c0_8] : memref<8x32xf32, #tpu.memory_space<vmem>>, vector<8x32xf32>
    %cst_9 = arith.constant dense<0.000000e+00> : vector<8x32xf32>
    %8 = tpu.matmul %7, %0, %cst_9 {dimension_numbers = #tpu.dot_dimension_numbers<[1], [0], [0], [1], [0, 0, 1, 1], [], []>} : vector<8x32xf32>, vector<32x32xf32>, vector<8x32xf32> -> vector<8x32xf32>
    %9 = vector.broadcast %1 : vector<1x32xf32> to vector<8x32xf32>
    %10 = arith.addf %8, %9 : vector<8x32xf32>
    %c0_10 = arith.constant 0 : index
    %c0_11 = arith.constant 0 : index
    %11 = vector.load %arg6[%c0_10, %c0_11] : memref<8x32xf32, #tpu.memory_space<vmem>>, vector<8x32xf32>
    tpu.vector_store %arg6[%c0_10, %c0_11], %10 {strides = array<i32>} : memref<8x32xf32, #tpu.memory_space<vmem>>, vector<8x32xf32>,
    return
  }
  func.func @transform_0(%arg0: i32) -> (i32, i32) {
    %c0_i32 = arith.constant 0 : i32
    %c0_i32_0 = arith.constant 0 : i32
    return %arg0, %c0_i32 : i32, i32
  }
  func.func @transform_1(%arg0: i32) -> (i32, i32) {
    %c0_i32 = arith.constant 0 : i32
    %c0_i32_0 = arith.constant 0 : i32
    return %arg0, %c0_i32 : i32, i32
  }
  func.func @transform_2(%arg0: i32) -> (i32, i32) {
    %c0_i32 = arith.constant 0 : i32
    %c0_i32_0 = arith.constant 0 : i32
    %c0_i32_1 = arith.constant 0 : i32
    return %c0_i32, %c0_i32_0 : i32, i32
  }
  func.func @transform_3(%arg0: i32) -> (i32, i32) {
    %c0_i32 = arith.constant 0 : i32
    %c0_i32_0 = arith.constant 0 : i32
    %c0_i32_1 = arith.constant 0 : i32
    return %c0_i32, %c0_i32_0 : i32, i32
  }
  func.func @transform_4(%arg0: i32) -> (i32, i32) {
    %c0_i32 = arith.constant 0 : i32
    %c0_i32_0 = arith.constant 0 : i32
    return %arg0, %c0_i32 : i32, i32
  }
  func.func @transform_5(%arg0: i32) -> (i32, i32) {
    %c0_i32 = arith.constant 0 : i32
    %c0_i32_0 = arith.constant 0 : i32
    return %arg0, %c0_i32 : i32, i32
  }
}

</mosaic_0001>

<llo_original>
// kernel: siamese_forward_pair.1
$region0: #{siamese_forward_pair.1}
  #allocation0 [shape = 'u32[]', space=smem, size = 0x4, offset = 0x4, fixed_abs, tag = 'smem constant byte address 0x4 - core index']
  #allocation1 [shape = 'u32[144,128]{1,0:T(1,128)}', space=vmem, size = 0x12000, scoped, tag = 'internal scratch']
  %s0 = inlined_call_operand.hbm [shape: f32[12,32], index: 0, kind: input, shape index: {}]
  %s1 = inlined_call_operand.hbm [shape: f32[12,32], index: 1, kind: input, shape index: {}]
  %s2 = inlined_call_operand.hbm [shape: f32[32,32], index: 2, kind: input, shape index: {}]
  %s3 = inlined_call_operand.vmem [shape: f32[1,32], index: 3, kind: input, shape index: {}]
  %s4 = inlined_call_operand.hbm [shape: f32[12,32], index: 4, kind: output, shape index: {0}]
  %s5 = inlined_call_operand.hbm [shape: f32[12,32], index: 5, kind: output, shape index: {1}]
  %6 = xla_tuple %s4, %s5
  %s7 = sld [smem:[#allocation0]]
  $region69: #{siamese_forward_pair.1} parent=0
    _
  %s9 = ssub.s32 1, %s7
  %s10 = scalar_select 0, %s9, %s7
  $region1: #{siamese_forward_pair.1} parent=0
    #allocation2 [shape = 'u8[8192]{0}', space=vmem, size = 0x2000, scoped, tag = 'input window, operand 0']
    #allocation3 [shape = 's32[2]{0}', space=sflag, size = 0x8, scoped, tag = 'scoped memory for siamese_forward_pair.1']
    #allocation4 [shape = 's32[2]{0}', space=sflag, size = 0x8, scoped, tag = 'scoped memory for siamese_forward_pair.1']
    #allocation5 [shape = 'u8[8192]{0}', space=vmem, size = 0x2000, scoped, tag = 'input window, operand 1']
    #allocation6 [shape = 's32[2]{0}', space=sflag, size = 0x8, scoped, tag = 'scoped memory for siamese_forward_pair.1']
    #allocation7 [shape = 'u8[16384]{0}', space=vmem, size = 0x4000, scoped, tag = 'input window, operand 2, single buffered']
    #allocation8 [shape = 'u8[8192]{0}', space=vmem, size = 0x2000, scoped, tag = 'output window, operand 0']
    #allocation9 [shape = 'u8[8192]{0}', space=vmem, size = 0x2000, scoped, tag = 'output window, operand 1']
    #allocation10 [shape = 's32[2]{0}', space=sflag, size = 0x8, scoped, tag = 'scoped memory for siamese_forward_pair.1']
    %11 = vsyncpa [#allocation3], 0
    %s12 = scalar_lea.sflag [#allocation3], 1
    %13 = vsyncpa %s12, 0
    %14 = vsyncpa [#allocation6], 0
    %s15 = scalar_lea.sflag [#allocation6], 1
    %16 = vsyncpa %s15, 0
    %17 = vsyncpa [#allocation4], 0
    %s18 = scalar_lea.sflag [#allocation4], 1
    %19 = vsyncpa %s18, 0
    %20 = vsyncpa [#allocation10], 0
    %s21 = scalar_lea.sflag [#allocation10], 1
    %22 = vsyncpa %s21, 0
    loop: start=0, step=1, limit=4
    $region2: #{siamese_forward_pair.1} parent=1 // loop_pre_header
      _
    $region3: #{siamese_forward_pair.1} parent=1 // loop_header
      %s24 = sphi 0, %s28
      %p25 = scmp.ge.s32.totalorder %s24, 4
      %s34 = sphi 0, %s36
      %s37 = sphi 0, %s34
      %s38 = sphi 0, %s37
      %s54 = sphi 0, %s38
      %s60 = sphi 0, %s62
      %s63 = sphi 0, %s60
      %s64 = sphi 0, %s63
      %s80 = sphi 0, %s64
      %s84 = sphi 0, %s84
      %s86 = sphi 0, %s84
      %s87 = sphi 0, %s86
      %s101 = sphi 0, %s87
      %s105 = sphi 0, %s105
      %s107 = sphi 0, %s105
      %s108 = sphi 0, %s107
      %s122 = sphi 0, %s108
      %s128 = sphi 0, %s130
      %s131 = sphi 0, %s128
      %s132 = sphi 0, %s131
      %s148 = sphi 0, %s132
      %s154 = sphi 0, %s156
      %s157 = sphi 0, %s154
      %s158 = sphi 0, %s157
      %s174 = sphi 0, %s158
    $region4: #{siamese_forward_pair.1} parent=1 // loop_header_branch
      %27 = sbr.rel (%p25) target = $region8
    $region5: #{siamese_forward_pair.1} parent=1 // loop_body
      %s29 = ssub.s32 %s24, 1
      %s30 = ssub.s32 %s24, 2
      %s31 = sadd.s32 %s24, 1
      %s32 = ssub.s32 %s24, %s31
      %p33 = scmp.eq.s32.totalorder %s32, 0
      %s35 = sadd.s32 %s34, 1
      %s36 = scalar_select %p33, %s34, %s35
      %p39 = pneg %p33
      %p40 = scmp.eq.s32.totalorder %s24, 1
      %p41 = por %p39, %p40
      %p42 = scmp.ne.s32.totalorder %s34, %s37
      %p43 = scmp.eq.s32.totalorder %s24, 0
      %p44 = por %p42, %p43
      %p45 = scmp.ne.s32.totalorder %s34, %s37
      %p46 = scmp.eq.s32.totalorder %s29, 1
      %p47 = por %p45, %p46
      %p48 = scmp.ne.s32.totalorder %s37, %s38
      %p49 = scmp.eq.s32.totalorder %s29, 0
      %p50 = por %p48, %p49
      %p51 = scmp.ne.s32.totalorder %s37, %s38
      %p52 = scmp.eq.s32.totalorder %s30, 1
      %p53 = por %p51, %p52
      %p55 = scmp.ne.s32.totalorder %s38, %s54
      %p56 = scmp.eq.s32.totalorder %s30, 0
      %p57 = por %p55, %p56
      %s58 = ssub.s32 %s24, %s31
      %p59 = scmp.eq.s32.totalorder %s58, 0
      %s61 = sadd.s32 %s60, 1
      %s62 = scalar_select %p59, %s60, %s61
      %p65 = pneg %p59
      %p66 = scmp.eq.s32.totalorder %s24, 1
      %p67 = por %p65, %p66
      %p68 = scmp.ne.s32.totalorder %s60, %s63
      %p69 = scmp.eq.s32.totalorder %s24, 0
      %p70 = por %p68, %p69
      %p71 = scmp.ne.s32.totalorder %s60, %s63
      %p72 = scmp.eq.s32.totalorder %s29, 1
      %p73 = por %p71, %p72
      %p74 = scmp.ne.s32.totalorder %s63, %s64
      %p75 = scmp.eq.s32.totalorder %s29, 0
      %p76 = por %p74, %p75
      %p77 = scmp.ne.s32.totalorder %s63, %s64
      %p78 = scmp.eq.s32.totalorder %s30, 1
      %p79 = por %p77, %p78
      %p81 = scmp.ne.s32.totalorder %s64, %s80
      %p82 = scmp.eq.s32.totalorder %s30, 0
      %p83 = por %p81, %p82
      %s85 = sadd.s32 %s84, 1
      %p88 = scmp.eq.s32.totalorder %s24, 1
      %p89 = scmp.ne.s32.totalorder %s84, %s86
      %p90 = scmp.eq.s32.totalorder %s24, 0
      %p91 = por %p89, %p90
      %p92 = scmp.ne.s32.totalorder %s84, %s86
      %p93 = scmp.eq.s32.totalorder %s29, 1
      %p94 = por %p92, %p93
      %p95 = scmp.ne.s32.totalorder %s86, %s87
      %p96 = scmp.eq.s32.totalorder %s29, 0
      %p97 = por %p95, %p96
      %p98 = scmp.ne.s32.totalorder %s86, %s87
      %p99 = scmp.eq.s32.totalorder %s30, 1
      %p100 = por %p98, %p99
      %p102 = scmp.ne.s32.totalorder %s87, %s101
      %p103 = scmp.eq.s32.totalorder %s30, 0
      %p104 = por %p102, %p103
      %s106 = sadd.s32 %s105, 1
      %p109 = scmp.eq.s32.totalorder %s24, 1
      %p110 = scmp.ne.s32.totalorder %s105, %s107
      %p111 = scmp.eq.s32.totalorder %s24, 0
      %p112 = por %p110, %p111
      %p113 = scmp.ne.s32.totalorder %s105, %s107
      %p114 = scmp.eq.s32.totalorder %s29, 1
      %p115 = por %p113, %p114
      %p116 = scmp.ne.s32.totalorder %s107, %s108
      %p117 = scmp.eq.s32.totalorder %s29, 0
      %p118 = por %p116, %p117
      %p119 = scmp.ne.s32.totalorder %s107, %s108
      %p120 = scmp.eq.s32.totalorder %s30, 1
      %p121 = por %p119, %p120
      %p123 = scmp.ne.s32.totalorder %s108, %s122
      %p124 = scmp.eq.s32.totalorder %s30, 0
      %p125 = por %p123, %p124
      %s126 = ssub.s32 %s24, %s31
      %p127 = scmp.eq.s32.totalorder %s126, 0
      %s129 = sadd.s32 %s128, 1
      %s130 = scalar_select %p127, %s128, %s129
      %p133 = pneg %p127
      %p134 = scmp.eq.s32.totalorder %s24, 1
      %p135 = por %p133, %p134
      %p136 = scmp.ne.s32.totalorder %s128, %s131
      %p137 = scmp.eq.s32.totalorder %s24, 0
      %p138 = por %p136, %p137
      %p139 = scmp.ne.s32.totalorder %s128, %s131
      %p140 = scmp.eq.s32.totalorder %s29, 1
      %p141 = por %p139, %p140
      %p142 = scmp.ne.s32.totalorder %s131, %s132
      %p143 = scmp.eq.s32.totalorder %s29, 0
      %p144 = por %p142, %p143
      %p145 = scmp.ne.s32.totalorder %s131, %s132
      %p146 = scmp.eq.s32.totalorder %s30, 1
      %p147 = por %p145, %p146
      %p149 = scmp.ne.s32.totalorder %s132, %s148
      %p150 = scmp.eq.s32.totalorder %s30, 0
      %p151 = por %p149, %p150
      %s152 = ssub.s32 %s24, %s31
      %p153 = scmp.eq.s32.totalorder %s152, 0
      %s155 = sadd.s32 %s154, 1
      %s156 = scalar_select %p153, %s154, %s155
      %p159 = pneg %p153
      %p160 = scmp.eq.s32.totalorder %s24, 1
      %p161 = por %p159, %p160
      %p162 = scmp.ne.s32.totalorder %s154, %s157
      %p163 = scmp.eq.s32.totalorder %s24, 0
      %p164 = por %p162, %p163
      %p165 = scmp.ne.s32.totalorder %s154, %s157
      %p166 = scmp.eq.s32.totalorder %s29, 1
      %p167 = por %p165, %p166
      %p168 = scmp.ne.s32.totalorder %s157, %s158
      %p169 = scmp.eq.s32.totalorder %s29, 0
      %p170 = por %p168, %p169
      %p171 = scmp.ne.s32.totalorder %s157, %s158
      %p172 = scmp.eq.s32.totalorder %s30, 1
      %p173 = por %p171, %p172
      %p175 = scmp.ne.s32.totalorder %s158, %s174
      %p176 = scmp.eq.s32.totalorder %s30, 0
      %p177 = por %p175, %p176
      %p178 = scmp.le.s32.totalorder 1, %s24
      %p179 = scmp.lt.s32.totalorder %s24, 3
      %p180 = pnand %p178, %p179
      %p181 = pneg %p180
      // Predicated region
      $region9: #{siamese_forward_pair.1} parent=5 // pred_check
        _
      $region10: #{siamese_forward_pair.1} parent=5 // pred_check_branch
        %183 = sbr.rel (%p180) target = $region12
      $region11: #{siamese_forward_pair.1} parent=5 // pred_region
        %s184 = ssub.s32 %s24, 1
        // Predicated region
        $region13: #{siamese_forward_pair.1} parent=11 // pred_check
          %p185 = pneg %p97
        $region14: #{siamese_forward_pair.1} parent=11 // pred_check_branch
          %187 = sbr.rel (%p185) target = $region16
        $region15: #{siamese_forward_pair.1} parent=11 // pred_region
          %s189 = ssub.s32 512, 512
          %190 = vsyncadd [#allocation6], %s189
          %s191 = sshll.u32 [#allocation7], 4
          %s192 = int_to_ptr.vmem [resolvable:$true] %s191
          %197 = dma.hbm_to_vmem [thread:$0]  %s2, 512, %s192, [#allocation6], 128, 128, 8
        $region16: #{siamese_forward_pair.1} parent=11 // pred_fallthru
          _
        // Predicated region
        $region17: #{siamese_forward_pair.1} parent=11 // pred_check
          %p198 = pneg %p118
        $region18: #{siamese_forward_pair.1} parent=11 // pred_check_branch
          %200 = sbr.rel (%p198) target = $region20
        $region19: #{siamese_forward_pair.1} parent=11 // pred_region
          _
        $region20: #{siamese_forward_pair.1} parent=11 // pred_fallthru
          _
      $region12: #{siamese_forward_pair.1} parent=5 // pred_fallthru
        _
      %p201 = scmp.lt.s32.totalorder %s24, 2
      // Predicated region
      $region21: #{siamese_forward_pair.1} parent=5 // pred_check
        %p202 = pneg %p201
      $region22: #{siamese_forward_pair.1} parent=5 // pred_check_branch
        %204 = sbr.rel (%p202) target = $region24
      $region23: #{siamese_forward_pair.1} parent=5 // pred_region
        // Predicated region
        $region25: #{siamese_forward_pair.1} parent=23 // pred_check
          %p205 = pneg %p44
        $region26: #{siamese_forward_pair.1} parent=23 // pred_check_branch
          %207 = sbr.rel (%p205) target = $region28
        $region27: #{siamese_forward_pair.1} parent=23 // pred_region
          %s208 = sand.u32 %s34, 1
          %s209 = scalar_lea.sflag [#allocation3], %s208
          %s210 = sand.u32 %s34, 1
          %s211 = smul.addr %s210, 8
          %s212 = scalar_lea.vmem [#allocation2], %s211
          %s214 = ssub.s32 128, 128
          %215 = vsyncadd %s209, %s214
          %s216 = smul.addr %s24, 128
          %s217 = scalar_lea.hbm %s0, %s216
          %s219 = sshll.u32 %s212, 4
          %s220 = int_to_ptr.vmem [resolvable:$true] %s219
          %222 = dma.hbm_to_vmem [thread:$0]  %s217, 128, %s220, %s209
        $region28: #{siamese_forward_pair.1} parent=23 // pred_fallthru
          _
        // Predicated region
        $region29: #{siamese_forward_pair.1} parent=23 // pred_check
          %p223 = pneg %p70
        $region30: #{siamese_forward_pair.1} parent=23 // pred_check_branch
          %225 = sbr.rel (%p223) target = $region32
        $region31: #{siamese_forward_pair.1} parent=23 // pred_region
          %s226 = sand.u32 %s24, 1
          %s227 = scalar_lea.sflag [#allocation6], %s226
          %s228 = sand.u32 %s60, 1
          %s229 = smul.addr %s228, 8
          %s230 = scalar_lea.vmem [#allocation5], %s229
          %s232 = ssub.s32 128, 128
          %233 = vsyncadd %s227, %s232
          %s234 = smul.addr %s24, 128
          %s235 = scalar_lea.hbm %s1, %s234
          %s237 = sshll.u32 %s230, 4
          %s238 = int_to_ptr.vmem [resolvable:$true] %s237
          %240 = dma.hbm_to_vmem [thread:$0]  %s235, 128, %s238, %s227
        $region32: #{siamese_forward_pair.1} parent=23 // pred_fallthru
          _
      $region24: #{siamese_forward_pair.1} parent=5 // pred_fallthru
        _
      %p241 = scmp.le.s32.totalorder 1, %s24
      %p242 = scmp.lt.s32.totalorder %s24, 3
      %p243 = pnand %p241, %p242
      %p244 = pneg %p243
      // Predicated region
      $region33: #{siamese_forward_pair.1} parent=5 // pred_check
        _
      $region34: #{siamese_forward_pair.1} parent=5 // pred_check_branch
        %246 = sbr.rel (%p243) target = $region36
      $region35: #{siamese_forward_pair.1} parent=5 // pred_region
        %s247 = ssub.s32 %s24, 1
        %s248 = sand.u32 %s37, 1
        %s249 = scalar_lea.sflag [#allocation3], %s248
        %s250 = sand.u32 %s37, 1
        %s251 = smul.addr %s250, 8
        %s252 = scalar_lea.vmem [#allocation2], %s251
        // Predicated region
        $region37: #{siamese_forward_pair.1} parent=35 // pred_check
          %p253 = pneg %p50
        $region38: #{siamese_forward_pair.1} parent=35 // pred_check_branch
          %255 = sbr.rel (%p253) target = $region40
        $region39: #{siamese_forward_pair.1} parent=35 // pred_region
          %256 = dma.done %s249, 128
        $region40: #{siamese_forward_pair.1} parent=35 // pred_fallthru
          _
        %s257 = sand.u32 %s29, 1
        %s258 = scalar_lea.sflag [#allocation6], %s257
        %s259 = sand.u32 %s63, 1
        %s260 = smul.addr %s259, 8
        %s261 = scalar_lea.vmem [#allocation5], %s260
        // Predicated region
        $region41: #{siamese_forward_pair.1} parent=35 // pred_check
          %p262 = pneg %p76
        $region42: #{siamese_forward_pair.1} parent=35 // pred_check_branch
          %264 = sbr.rel (%p262) target = $region44
        $region43: #{siamese_forward_pair.1} parent=35 // pred_region
          %265 = dma.done %s258, 128
        $region44: #{siamese_forward_pair.1} parent=35 // pred_fallthru
          _
        // Predicated region
        $region45: #{siamese_forward_pair.1} parent=35 // pred_check
          %p266 = pneg %p97
        $region46: #{siamese_forward_pair.1} parent=35 // pred_check_branch
          %268 = sbr.rel (%p266) target = $region48
        $region47: #{siamese_forward_pair.1} parent=35 // pred_region
          %269 = dma.done [#allocation6], 512
        $region48: #{siamese_forward_pair.1} parent=35 // pred_fallthru
          _
        %s270 = sand.u32 %s37, 1
        %s271 = scalar_lea.sflag [#allocation3], %s270
        %s272 = sand.u32 %s37, 1
        %s273 = smul.addr %s272, 8
        %s274 = scalar_lea.vmem [#allocation2], %s273
        %p275 = pneg %p50
        %p276 = pneg %p47
        %s277 = sand.u32 %s29, 1
        %s278 = scalar_lea.sflag [#allocation6], %s277
        %s279 = sand.u32 %s63, 1
        %s280 = smul.addr %s279, 8
        %s281 = scalar_lea.vmem [#allocation5], %s280
        %p282 = pneg %p76
        %p283 = pneg %p73
        %p284 = pneg %p97
        %p285 = pneg %p94
        %p286 = pneg %p118
        %p287 = pneg %p115
        %p288 = pneg %p144
        %p289 = pneg %p141
        %s290 = sand.u32 %s131, 1
        %s291 = scalar_lea.sflag [#allocation4], %s290
        %s292 = sand.u32 %s131, 1
        %s293 = smul.addr %s292, 8
        %s294 = scalar_lea.vmem [#allocation8], %s293
        %p295 = pneg %p170
        %p296 = pneg %p167
        %s297 = sand.u32 %s157, 1
        %s298 = scalar_lea.sflag [#allocation10], %s297
        %s299 = sand.u32 %s157, 1
        %s300 = smul.addr %s299, 8
        %s301 = scalar_lea.vmem [#allocation9], %s300
        %v302 = vld [vmem:[#allocation7] sm:$0xff]
        %v303 = vld [vmem:[#allocation7 + $0x8] sm:$0xff]
        %v304 = vld [vmem:[#allocation7 + $0x10] sm:$0xff]
        %v305 = vld [vmem:[#allocation7 + $0x18] sm:$0xff]
        %v306 = vld [vmem:[%s3] sm:$0x1]
        %v307 = vld [vmem:[%s252] sm:$0xff]
        %v309 = vlaneseq
        %v310 = vshrl.u32 %v309, 7
        %v311 = vsub.s32 0, %v310
        %v312 = vrot.slane %v306, %v311
        %vm314 = vcmask 261120
        %v316 = vsel %vm314, %v307, 0
        %318 = vmatprep.subr.mxu0 0.0
        %319 = vmatpush1.msra.mxu0 0.0
        %320 = vmatprep.subr.mxu0 0.0
        %321 = vmatpush1.msra.mxu0 0.0
        %322 = vmatprep.subr.mxu0 0.0
        %323 = vmatpush1.msra.mxu0 0.0
        %324 = vmatprep.subr.mxu0 0.0
        %325 = vmatpush1.msra.mxu0 0.0
        %326 = vmatprep.subr.mxu0 0.0
        %327 = vmatpush1.msra.mxu0 0.0
        %328 = vmatprep.subr.mxu0 0.0
        %329 = vmatpush1.msra.mxu0 0.0
        %330 = vmatprep.subr.mxu0 0.0
        %331 = vmatpush1.msra.mxu0 0.0
        %332 = vmatprep.subr.mxu0 0.0
        %333 = vmatpush1.msra.mxu0 0.0
        %334 = vmatprep.subr.mxu0 0.0
        %335 = vmatpush1.msra.mxu0 0.0
        %336 = vmatprep.subr.mxu0 0.0
        %337 = vmatpush1.msra.mxu0 0.0
        %338 = vmatprep.subr.mxu0 0.0
        %339 = vmatpush1.msra.mxu0 0.0
        %340 = vmatprep.subr.mxu0 0.0
        %341 = vmatpush1.msra.mxu0 0.0
        %342 = vmatprep.subr.mxu0 0.0
        %343 = vmatpush1.msra.mxu0 %v305
        %344 = vmatprep.subr.mxu0 0.0
        %345 = vmatpush1.msra.mxu0 %v304
        %346 = vmatprep.subr.mxu0 0.0
        %347 = vmatpush1.msra.mxu0 %v303
        %348 = vmatprep.subr.mxu0 0.0
        %349 = vmatpush1.msra.mxu0 %v302
        %350 = vmatprep.subr.mxu0 0.0
        %351 = vmatpush2.msra.mxu0 0.0
        %352 = vmatprep.subr.mxu0 0.0
        %353 = vmatpush2.msra.mxu0 0.0
        %354 = vmatprep.subr.mxu0 0.0
        %355 = vmatpush2.msra.mxu0 0.0
        %356 = vmatprep.subr.mxu0 0.0
        %357 = vmatpush2.msra.mxu0 0.0
        %358 = vmatprep.subr.mxu0 0.0
        %359 = vmatpush2.msra.mxu0 0.0
        %360 = vmatprep.subr.mxu0 0.0
        %361 = vmatpush2.msra.mxu0 0.0
        %362 = vmatprep.subr.mxu0 0.0
        %363 = vmatpush2.msra.mxu0 0.0
        %364 = vmatprep.subr.mxu0 0.0
        %365 = vmatpush2.msra.mxu0 0.0
        %366 = vmatprep.subr.mxu0 0.0
        %367 = vmatpush2.msra.mxu0 0.0
        %368 = vmatprep.subr.mxu0 0.0
        %369 = vmatpush2.msra.mxu0 0.0
        %370 = vmatprep.subr.mxu0 0.0
        %371 = vmatpush2.msra.mxu0 0.0
        %372 = vmatprep.subr.mxu0 0.0
        %373 = vmatpush2.msra.mxu0 0.0
        %374 = vmatprep.subr.mxu0 0.0
        %375 = vmatpush2.msra.mxu0 0.0
        %376 = vmatprep.subr.mxu0 0.0
        %377 = vmatpush2.msra.mxu0 0.0
        %378 = vmatprep.subr.mxu0 0.0
        %379 = vmatpush2.msra.mxu0 0.0
        %380 = vmatprep.subr.mxu0 0.0
        %381 = vmatpush2.msra.mxu0 0.0
        %382 = vmatprep.mubr.f32.mxu0 0.0
        %383 = vmatmul.mubr.f32.gmra.mxu0 %v316
        %v384 = vpop.f32.mrf.mxu0
        %v385 = vadd.f32 %v312, %v384
        %v386 = vpop.f32.mrf.mxu0
        %387 = vdwg.mxu0
        %388 = vst.msk [vmem:[%s294] sm:$0xff] %vm314, %v385
        %v389 = vld [vmem:[%s261] sm:$0xff]
        %v391 = vsel %vm314, %v389, 0
        %393 = vmatprep.subr.mxu0 0.0
        %394 = vmatpush1.msra.mxu0 0.0
        %395 = vmatprep.subr.mxu0 0.0
        %396 = vmatpush1.msra.mxu0 0.0
        %397 = vmatprep.subr.mxu0 0.0
        %398 = vmatpush1.msra.mxu0 0.0
        %399 = vmatprep.subr.mxu0 0.0
        %400 = vmatpush1.msra.mxu0 0.0
        %401 = vmatprep.subr.mxu0 0.0
        %402 = vmatpush1.msra.mxu0 0.0
        %403 = vmatprep.subr.mxu0 0.0
        %404 = vmatpush1.msra.mxu0 0.0
        %405 = vmatprep.subr.mxu0 0.0
        %406 = vmatpush1.msra.mxu0 0.0
        %407 = vmatprep.subr.mxu0 0.0
        %408 = vmatpush1.msra.mxu0 0.0
        %409 = vmatprep.subr.mxu0 0.0
        %410 = vmatpush1.msra.mxu0 0.0
        %411 = vmatprep.subr.mxu0 0.0
        %412 = vmatpush1.msra.mxu0 0.0
        %413 = vmatprep.subr.mxu0 0.0
        %414 = vmatpush1.msra.mxu0 0.0
        %415 = vmatprep.subr.mxu0 0.0
        %416 = vmatpush1.msra.mxu0 0.0
        %417 = vmatprep.subr.mxu0 0.0
        %418 = vmatpush1.msra.mxu0 %v305
        %419 = vmatprep.subr.mxu0 0.0
        %420 = vmatpush1.msra.mxu0 %v304
        %421 = vmatprep.subr.mxu0 0.0
        %422 = vmatpush1.msra.mxu0 %v303
        %423 = vmatprep.subr.mxu0 0.0
        %424 = vmatpush1.msra.mxu0 %v302
        %425 = vmatprep.subr.mxu0 0.0
        %426 = vmatpush2.msra.mxu0 0.0
        %427 = vmatprep.subr.mxu0 0.0
        %428 = vmatpush2.msra.mxu0 0.0
        %429 = vmatprep.subr.mxu0 0.0
        %430 = vmatpush2.msra.mxu0 0.0
        %431 = vmatprep.subr.mxu0 0.0
        %432 = vmatpush2.msra.mxu0 0.0
        %433 = vmatprep.subr.mxu0 0.0
        %434 = vmatpush2.msra.mxu0 0.0
        %435 = vmatprep.subr.mxu0 0.0
        %436 = vmatpush2.msra.mxu0 0.0
        %437 = vmatprep.subr.mxu0 0.0
        %438 = vmatpush2.msra.mxu0 0.0
        %439 = vmatprep.subr.mxu0 0.0
        %440 = vmatpush2.msra.mxu0 0.0
        %441 = vmatprep.subr.mxu0 0.0
        %442 = vmatpush2.msra.mxu0 0.0
        %443 = vmatprep.subr.mxu0 0.0
        %444 = vmatpush2.msra.mxu0 0.0
        %445 = vmatprep.subr.mxu0 0.0
        %446 = vmatpush2.msra.mxu0 0.0
        %447 = vmatprep.subr.mxu0 0.0
        %448 = vmatpush2.msra.mxu0 0.0
        %449 = vmatprep.subr.mxu0 0.0
        %450 = vmatpush2.msra.mxu0 0.0
        %451 = vmatprep.subr.mxu0 0.0
        %452 = vmatpush2.msra.mxu0 0.0
        %453 = vmatprep.subr.mxu0 0.0
        %454 = vmatpush2.msra.mxu0 0.0
        %455 = vmatprep.subr.mxu0 0.0
        %456 = vmatpush2.msra.mxu0 0.0
        %457 = vmatprep.mubr.f32.mxu0 0.0
        %458 = vmatmul.mubr.f32.gmra.mxu0 %v391
        %v459 = vpop.f32.mrf.mxu0
        %v460 = vadd.f32 %v312, %v459
        %v461 = vpop.f32.mrf.mxu0
        %462 = vdwg.mxu0
        %463 = vst.msk [vmem:[%s301] sm:$0xff] %vm314, %v460
        %s464 = sand.u32 %s131, 1
        %s465 = scalar_lea.sflag [#allocation4], %s464
        %s466 = sand.u32 %s131, 1
        %s467 = smul.addr %s466, 8
        %s468 = scalar_lea.vmem [#allocation8], %s467
        %s469 = sand.u32 %s157, 1
        %s470 = scalar_lea.sflag [#allocation10], %s469
        %s471 = sand.u32 %s157, 1
        %s472 = smul.addr %s471, 8
        %s473 = scalar_lea.vmem [#allocation9], %s472
        // Predicated region
        $region49: #{siamese_forward_pair.1} parent=35 // pred_check
          %p474 = pneg %p141
        $region50: #{siamese_forward_pair.1} parent=35 // pred_check_branch
          %476 = sbr.rel (%p474) target = $region52
        $region51: #{siamese_forward_pair.1} parent=35 // pred_region
          %s478 = ssub.s32 128, 128
          %479 = vsyncadd %s465, %s478
          %s480 = smul.addr %s29, 128
          %s481 = scalar_lea.hbm %s4, %s480
          %s483 = sshll.u32 %s468, 4
          %s484 = int_to_ptr.vmem [resolvable:$true] %s483
          %486 = dma.vmem_to_hbm [thread:$0]  %s484, 128, %s481, %s465
        $region52: #{siamese_forward_pair.1} parent=35 // pred_fallthru
          _
        // Predicated region
        $region53: #{siamese_forward_pair.1} parent=35 // pred_check
          %p487 = pneg %p167
        $region54: #{siamese_forward_pair.1} parent=35 // pred_check_branch
          %489 = sbr.rel (%p487) target = $region56
        $region55: #{siamese_forward_pair.1} parent=35 // pred_region
          %s491 = ssub.s32 128, 128
          %492 = vsyncadd %s470, %s491
          %s493 = smul.addr %s29, 128
          %s494 = scalar_lea.hbm %s5, %s493
          %s496 = sshll.u32 %s473, 4
          %s497 = int_to_ptr.vmem [resolvable:$true] %s496
          %499 = dma.vmem_to_hbm [thread:$0]  %s497, 128, %s494, %s470
        $region56: #{siamese_forward_pair.1} parent=35 // pred_fallthru
          _
      $region36: #{siamese_forward_pair.1} parent=5 // pred_fallthru
        _
      %p500 = scmp.le.s32.totalorder 2, %s24
      // Predicated region
      $region57: #{siamese_forward_pair.1} parent=5 // pred_check
        %p501 = pneg %p500
      $region58: #{siamese_forward_pair.1} parent=5 // pred_check_branch
        %503 = sbr.rel (%p501) target = $region60
      $region59: #{siamese_forward_pair.1} parent=5 // pred_region
        %s504 = ssub.s32 %s24, 2
        // Predicated region
        $region61: #{siamese_forward_pair.1} parent=59 // pred_check
          %p505 = pneg %p147
        $region62: #{siamese_forward_pair.1} parent=59 // pred_check_branch
          %507 = sbr.rel (%p505) target = $region64
        $region63: #{siamese_forward_pair.1} parent=59 // pred_region
          %s508 = sand.u32 %s132, 1
          %s509 = scalar_lea.sflag [#allocation4], %s508
          %s510 = sand.u32 %s132, 1
          %s511 = smul.addr %s510, 8
          %s512 = scalar_lea.vmem [#allocation8], %s511
          %513 = dma.done %s509, 128
        $region64: #{siamese_forward_pair.1} parent=59 // pred_fallthru
          _
        // Predicated region
        $region65: #{siamese_forward_pair.1} parent=59 // pred_check
          %p514 = pneg %p173
        $region66: #{siamese_forward_pair.1} parent=59 // pred_check_branch
          %516 = sbr.rel (%p514) target = $region68
        $region67: #{siamese_forward_pair.1} parent=59 // pred_region
          %s517 = sand.u32 %s158, 1
          %s518 = scalar_lea.sflag [#allocation10], %s517
          %s519 = sand.u32 %s158, 1
          %s520 = smul.addr %s519, 8
          %s521 = scalar_lea.vmem [#allocation9], %s520
          %522 = dma.done %s518, 128
        $region68: #{siamese_forward_pair.1} parent=59 // pred_fallthru
          _
      $region60: #{siamese_forward_pair.1} parent=5 // pred_fallthru
        _
    $region6: #{siamese_forward_pair.1} parent=1 // loop_footer
      %s28 = sadd.s32 1, %s24
    $region7: #{siamese_forward_pair.1} parent=1 // loop_footer_branch
      %23 = sbr.rel target = $region3
    $region8: #{siamese_forward_pair.1} parent=1 // loop_exit
      _
    %523 = vsyncpa [#allocation3], 1
    %s524 = scalar_lea.sflag [#allocation3], 1
    %525 = vsyncpa %s524, 1
    %526 = vsyncpa [#allocation6], 1
    %s527 = scalar_lea.sflag [#allocation6], 1
    %528 = vsyncpa %s527, 1
    %529 = vsyncpa [#allocation4], 1
    %s530 = scalar_lea.sflag [#allocation4], 1
    %531 = vsyncpa %s530, 1
    %532 = vsyncpa [#allocation10], 1
    %s533 = scalar_lea.sflag [#allocation10], 1
    %534 = vsyncpa %s533, 1

</llo_original>
